<compile_context>
chip_gen: v7x
topology: tpu7x:2x2x1
jax: 0.10.0
libtpu: 0.0.40
codegen_flags: <defaults>
</compile_context>

<pallas_src>
import numpy as np
import jax
import jax.numpy as jnp
from jax.experimental import pallas as pl
from jax.experimental.pallas import tpu as pltpu


# ---------------------------------------------------------------------------
# Kernel. Everything is carried "transposed": rows = (batch-in-group, w),
# columns = (channel, h). Per grid step (G batch elements):
#   P   = X^T @ [M1^T | M2^T]                 (M = kron(w_conv, I_H) @ H-FFT)
#   z^T = Cw^T @ P1 - Sw^T @ P2               (forward real DFT along W, ortho)
#   g^T = relu(z^T * scale + shift)           (eval-mode BN fused, f32)
#   H^T = g^T @ N^T                           (inverse FFT along H, ortho)
#   out^T = ICw^T @ Hr^T - ISw^T @ Hi^T       (irfft along W, Hermitian half-spec)
# ---------------------------------------------------------------------------
def _fourier_unit_kernel(xt_ref, mcat_ref, cwt_ref, swt_ref, nt_ref,
                         icwt_ref, iswt_ref, scale_ref, shift_ref, o_ref):
    cdt = mcat_ref.dtype                  # bf16 compute dtype for MXU inputs
    two_co_h = nt_ref.shape[0]            # 2 * Co * H
    co_h = two_co_h // 2

    xt = xt_ref[...]                                              # (G*W, C*H)

    # H-FFT + 1x1 conv fused: 256-lane-dense output.
    p = jnp.dot(xt, mcat_ref[...], preferred_element_type=jnp.float32)
    p = p.astype(cdt)                                             # (G*W, 4*Co*H)

    # Forward real DFT along W (ortho).  Slices are 128-lane aligned.
    zt = (jnp.dot(cwt_ref[...], p[:, :two_co_h],
                  preferred_element_type=jnp.float32)
          - jnp.dot(swt_ref[...], p[:, two_co_h:],
                    preferred_element_type=jnp.float32))          # (G*Wf, 2*Co*H)

    # BatchNorm (eval: fused per-channel scale/shift) + ReLU in f32.
    gt = jnp.maximum(zt * scale_ref[...] + shift_ref[...], 0.0).astype(cdt)

    # Inverse FFT along H fused into one matmul: [Hr | Hi]^T = g^T @ N^T.
    ht = jnp.dot(gt, nt_ref[...], preferred_element_type=jnp.float32).astype(cdt)

    # Inverse real DFT along W (Hermitian half-spectrum; DC/Nyquist imag dropped
    # automatically because their sine rows are exactly zero).
    out = (jnp.dot(icwt_ref[...], ht[:, :co_h],
                   preferred_element_type=jnp.float32)
           - jnp.dot(iswt_ref[...], ht[:, co_h:],
                     preferred_element_type=jnp.float32))         # (G*W, Co*H)

    o_ref[...] = out.astype(o_ref.dtype)


# ---------------------------------------------------------------------------
# Host-side constant fusion (built once, outside jit; no per-forward kron).
# ---------------------------------------------------------------------------
def fourier_unit_prepare(w_conv, bn_scale, bn_shift, *, H, W,
                         batch_group=1, const_dtype=jnp.bfloat16):
    """Fuse the FourierUnit's linear stages into a few matrices.

    w_conv: (2*Co, 2*C) 1x1 conv weight (no bias).
    bn_scale / bn_shift: (2*Co,) eval-mode BatchNorm fused scale/shift.
    batch_group: number of batch elements processed per grid step.
    """
    w_conv = np.asarray(w_conv, np.float64)
    bn_scale = np.asarray(bn_scale, np.float32)
    bn_shift = np.asarray(bn_shift, np.float32)
    Co, C = w_conv.shape[0] // 2, w_conv.shape[1] // 2
    Wf = W // 2 + 1
    G = int(batch_group)

    # 1-D ortho DFT matrices.
    m = np.arange(H)
    ang_h = 2.0 * np.pi * np.outer(m, m) / H
    Ch = np.cos(ang_h) / np.sqrt(H)                       # (H, H), symmetric
    Sh = np.sin(ang_h) / np.sqrt(H)

    w_idx, k_idx = np.arange(W), np.arange(Wf)
    ang_w = 2.0 * np.pi * np.outer(w_idx, k_idx) / W
    CW = np.cos(ang_w) / np.sqrt(W)                       # (W, Wf)
    SW = np.sin(ang_w) / np.sqrt(W)

    cmul = np.full((Wf,), 2.0)
    cmul[0] = 1.0
    if W % 2 == 0:
        cmul[-1] = 1.0                                    # Nyquist counted once
    ang_iw = 2.0 * np.pi * np.outer(k_idx, w_idx) / W
    ICw = cmul[:, None] * np.cos(ang_iw) / np.sqrt(W)     # (Wf, W)
    ISw = cmul[:, None] * np.sin(ang_iw) / np.sqrt(W)

    # Fuse H-FFT (block-diagonal over input channels) with the 1x1 conv:
    #   z = M @ [Yr; Yi],  M = kron(w_conv, I_H) @ [[ChB, ShB], [-ShB, ChB]].
    ChB, ShB = np.kron(np.eye(C), Ch), np.kron(np.eye(C), Sh)
    E = np.block([[ChB, ShB], [-ShB, ChB]])               # (2CH, 2CH)
    Wk = np.kron(w_conv, np.eye(H))                       # (2CoH, 2CH)
    M = Wk @ E
    CH = C * H
    Mcat = np.concatenate([M[:, :CH].T, M[:, CH:].T], axis=1)   # (CH, 4*Co*H)

    # Fuse inverse H-FFT:  [Hr; Hi] = N @ [Gr; Gi].
    ChBo, ShBo = np.kron(np.eye(Co), Ch), np.kron(np.eye(Co), Sh)
    NT = np.block([[ChBo, -ShBo], [ShBo, ChBo]]).T        # (2CoH, 2CoH)

    eye_g = np.eye(G)
    mats = {
        "mcat": Mcat,                                     # (C*H, 4*Co*H)
        "cwt": np.kron(eye_g, CW.T),                      # (G*Wf, G*W)
        "swt": np.kron(eye_g, SW.T),
        "nt": NT,                                         # (2*Co*H, 2*Co*H)
        "icwt": np.kron(eye_g, ICw.T),                    # (G*W, G*Wf)
        "iswt": np.kron(eye_g, ISw.T),
    }
    consts = {k: jnp.asarray(v, const_dtype) for k, v in mats.items()}
    # BN scale/shift per (conv-output-channel, h) column; stays f32.
    consts["scale"] = jnp.asarray(np.repeat(bn_scale, H)[None, :], jnp.float32)
    consts["shift"] = jnp.asarray(np.repeat(bn_shift, H)[None, :], jnp.float32)
    return consts


def default_batch_group(batch):
    """1 batch element per grid step on multi-TensorCore chips (batch -> cores via
    'parallel'); fold the whole batch into the row axis on single-core v5e/v6e."""
    try:
        kind = jax.devices()[0].device_kind.lower()
    except Exception:
        return batch
    return 1 if any(t in kind for t in ("v7", "7x", "v4", "v5p")) else batch


# ---------------------------------------------------------------------------
# Forward wrapper.
# ---------------------------------------------------------------------------
def fourier_unit_apply(x, consts):
    """FourierUnit.forward.  x: (B, C, H, W) f32 -> (B, Co, H, W) f32."""
    B, C, H, W = x.shape
    Wf = W // 2 + 1
    cdt = consts["mcat"].dtype
    G = consts["cwt"].shape[1] // W          # batch elements per grid step
    co_h = consts["nt"].shape[0] // 2
    assert B % G == 0 and consts["mcat"].shape[0] == C * H

    # rows = (b, w), cols = (c, h): one flat, lane-dense block per grid step.
    x2 = jnp.transpose(x, (0, 3, 1, 2)).reshape(B * W, C * H).astype(cdt)

    def const_spec(a):
        return pl.BlockSpec(a.shape, lambda i: (0, 0))    # resident across steps

    out2 = pl.pallas_call(
        _fourier_unit_kernel,
        out_shape=jax.ShapeDtypeStruct((B * W, co_h), jnp.float32),
        grid_spec=pltpu.PrefetchScalarGridSpec(
            num_scalar_prefetch=0,
            grid=(B // G,),
            in_specs=[
                pl.BlockSpec((G * W, C * H), lambda i: (i, 0)),
                const_spec(consts["mcat"]),
                const_spec(consts["cwt"]),
                const_spec(consts["swt"]),
                const_spec(consts["nt"]),
                const_spec(consts["icwt"]),
                const_spec(consts["iswt"]),
                const_spec(consts["scale"]),
                const_spec(consts["shift"]),
            ],
            out_specs=pl.BlockSpec((G * W, co_h), lambda i: (i, 0)),
        ),
        compiler_params=pltpu.CompilerParams(dimension_semantics=("parallel",)),
    )(x2, consts["mcat"], consts["cwt"], consts["swt"], consts["nt"],
      consts["icwt"], consts["iswt"], consts["scale"], consts["shift"])

    co = co_h // H
    return jnp.transpose(out2.reshape(B, W, co, H), (0, 2, 3, 1))


# ---------------------------------------------------------------------------
# Pure-JAX reference (mirrors the PyTorch module, eval-mode BN).
# ---------------------------------------------------------------------------
def fourier_unit_reference(x, w_conv, bn_scale, bn_shift):
    B, C, H, W = x.shape
    co = w_conv.shape[0] // 2
    f = jnp.fft.rfft2(x, s=(H, W), axes=(2, 3), norm="ortho")
    ff = jnp.concatenate([f.real, f.imag], axis=1)                 # (B, 2C, H, Wf)
    z = jnp.einsum("oc,bchw->bohw", w_conv, ff, precision="highest")
    z = jnp.maximum(z * bn_scale[None, :, None, None]
                    + bn_shift[None, :, None, None], 0.0)
    zc = z[:, :co] + 1j * z[:, co:]
    return jnp.fft.irfft2(zc, s=(H, W), axes=(2, 3), norm="ortho")


if __name__ == "__main__":
    key = jax.random.PRNGKey(0)
    kx, kw, kbn = jax.random.split(key, 3)

    B, C, H, W = 2, 4, 16, 16           # FourierUnit(in_channels=4, out_channels=4)
    Co = C

    x = jax.random.normal(kx, (B, C, H, W), jnp.float32)
    w_conv = jax.random.normal(kw, (2 * Co, 2 * C), jnp.float32) / np.sqrt(2 * C)

    k1, k2, k3, k4 = jax.random.split(kbn, 4)
    gamma = 1.0 + 0.1 * jax.random.normal(k1, (2 * Co,), jnp.float32)
    beta = 0.1 * jax.random.normal(k2, (2 * Co,), jnp.float32)
    mean = 0.1 * jax.random.normal(k3, (2 * Co,), jnp.float32)
    var = 0.5 + jax.random.uniform(k4, (2 * Co,), jnp.float32)
    bn_scale = gamma / jnp.sqrt(var + 1e-5)
    bn_shift = beta - mean * bn_scale

    consts = fourier_unit_prepare(w_conv, bn_scale, bn_shift, H=H, W=W,
                                  batch_group=default_batch_group(B))

    fu = jax.jit(fourier_unit_apply)
    out = fu(x, consts)
    jax.block_until_ready(out)

    assert out.shape == (B, Co, H, W) and out.dtype == jnp.float32

    # Loose correctness check vs. jnp.fft reference (bf16 MXU inputs -> ~1% error).
    ref = fourier_unit_reference(x, w_conv, bn_scale, bn_shift)
    err = float(jnp.max(jnp.abs(out - ref)) / (jnp.max(jnp.abs(ref)) + 1e-6))
    assert err < 0.1, f"relative-to-peak error too large: {err}"

    print("KERNEL_OK")
</pallas_src>

<mosaic_0001>
module attributes {stable_mosaic.version = 11 : i64} {
  func.func @_fourier_unit_kernel(%arg0: i32, %arg1: memref<32x64xbf16, #tpu.memory_space<vmem>>, %arg2: memref<64x256xbf16, #tpu.memory_space<vmem>>, %arg3: memref<18x32xbf16, #tpu.memory_space<vmem>>, %arg4: memref<18x32xbf16, #tpu.memory_space<vmem>>, %arg5: memref<128x128xbf16, #tpu.memory_space<vmem>>, %arg6: memref<32x18xbf16, #tpu.memory_space<vmem>>, %arg7: memref<32x18xbf16, #tpu.memory_space<vmem>>, %arg8: memref<1x128xf32, #tpu.memory_space<vmem>>, %arg9: memref<1x128xf32, #tpu.memory_space<vmem>>, %arg10: memref<32x64xf32, #tpu.memory_space<vmem>>) attributes {dimension_semantics = [#tpu.dimension_semantics<parallel>], iteration_bounds = array<i64: 1>, scalar_prefetch = 0 : i64, scratch_operands = 0 : i64, tpu.core_type = #tpu.core_type<tc>, window_params = [{transform_indices = @transform_0, window_bounds = array<i64: 32, 64>}, {pipeline_mode = #tpu.pipeline_mode<synchronous>, transform_indices = @transform_1, window_bounds = array<i64: 64, 256>}, {pipeline_mode = #tpu.pipeline_mode<synchronous>, transform_indices = @transform_2, window_bounds = array<i64: 18, 32>}, {pipeline_mode = #tpu.pipeline_mode<synchronous>, transform_indices = @transform_3, window_bounds = array<i64: 18, 32>}, {pipeline_mode = #tpu.pipeline_mode<synchronous>, transform_indices = @transform_4, window_bounds = array<i64: 128, 128>}, {pipeline_mode = #tpu.pipeline_mode<synchronous>, transform_indices = @transform_5, window_bounds = array<i64: 32, 18>}, {pipeline_mode = #tpu.pipeline_mode<synchronous>, transform_indices = @transform_6, window_bounds = array<i64: 32, 18>}, {pipeline_mode = #tpu.pipeline_mode<synchronous>, transform_indices = @transform_7, window_bounds = array<i64: 1, 128>}, {pipeline_mode = #tpu.pipeline_mode<synchronous>, transform_indices = @transform_8, window_bounds = array<i64: 1, 128>}, {transform_indices = @transform_9, window_bounds = array<i64: 32, 64>}]} {
    %c0 = arith.constant 0 : index
    %c0_0 = arith.constant 0 : index
    %0 = vector.load %arg1[%c0, %c0_0] : memref<32x64xbf16, #tpu.memory_space<vmem>>, vector<32x64xbf16>
    %c0_1 = arith.constant 0 : index
    %c0_2 = arith.constant 0 : index
    %1 = vector.load %arg2[%c0_1, %c0_2] : memref<64x256xbf16, #tpu.memory_space<vmem>>, vector<64x256xbf16>
    %cst = arith.constant dense<0.000000e+00> : vector<32x256xf32>
    %2 = tpu.matmul %0, %1, %cst {dimension_numbers = #tpu.dot_dimension_numbers<[1], [0], [0], [1], [0, 0, 1, 1], [], []>} : vector<32x64xbf16>, vector<64x256xbf16>, vector<32x256xf32> -> vector<32x256xf32>
    %3 = arith.truncf %2 : vector<32x256xf32> to vector<32x256xbf16>
    %c0_3 = arith.constant 0 : index
    %c0_4 = arith.constant 0 : index
    %4 = vector.load %arg3[%c0_3, %c0_4] : memref<18x32xbf16, #tpu.memory_space<vmem>>, vector<18x32xbf16>
    %5 = vector.extract_strided_slice %3 {offsets = [0, 0], sizes = [32, 128], strides = [1, 1]} : vector<32x256xbf16> to vector<32x128xbf16>
    %cst_5 = arith.constant dense<0.000000e+00> : vector<18x128xf32>
    %6 = tpu.matmul %4, %5, %cst_5 {dimension_numbers = #tpu.dot_dimension_numbers<[1], [0], [0], [1], [0, 0, 1, 1], [], []>} : vector<18x32xbf16>, vector<32x128xbf16>, vector<18x128xf32> -> vector<18x128xf32>
    %c0_6 = arith.constant 0 : index
    %c0_7 = arith.constant 0 : index
    %7 = vector.load %arg4[%c0_6, %c0_7] : memref<18x32xbf16, #tpu.memory_space<vmem>>, vector<18x32xbf16>
    %8 = vector.extract_strided_slice %3 {offsets = [0, 128], sizes = [32, 128], strides = [1, 1]} : vector<32x256xbf16> to vector<32x128xbf16>
    %cst_8 = arith.constant dense<0.000000e+00> : vector<18x128xf32>
    %9 = tpu.matmul %7, %8, %cst_8 {dimension_numbers = #tpu.dot_dimension_numbers<[1], [0], [0], [1], [0, 0, 1, 1], [], []>} : vector<18x32xbf16>, vector<32x128xbf16>, vector<18x128xf32> -> vector<18x128xf32>
    %10 = arith.subf %6, %9 : vector<18x128xf32>
    %c0_9 = arith.constant 0 : index
    %c0_10 = arith.constant 0 : index
    %11 = vector.load %arg8[%c0_9, %c0_10] : memref<1x128xf32, #tpu.memory_space<vmem>>, vector<1x128xf32>
    %12 = vector.broadcast %11 : vector<1x128xf32> to vector<18x128xf32>
    %13 = arith.mulf %10, %12 : vector<18x128xf32>
    %c0_11 = arith.constant 0 : index
    %c0_12 = arith.constant 0 : index
    %14 = vector.load %arg9[%c0_11, %c0_12] : memref<1x128xf32, #tpu.memory_space<vmem>>, vector<1x128xf32>
    %15 = vector.broadcast %14 : vector<1x128xf32> to vector<18x128xf32>
    %16 = arith.addf %13, %15 : vector<18x128xf32>
    %cst_13 = arith.constant 0.000000e+00 : f32
    %17 = vector.broadcast %cst_13 : f32 to vector<18x128xf32>
    %18 = arith.maximumf %16, %17 : vector<18x128xf32>
    %19 = arith.truncf %18 : vector<18x128xf32> to vector<18x128xbf16>
    %c0_14 = arith.constant 0 : index
    %c0_15 = arith.constant 0 : index
    %20 = vector.load %arg5[%c0_14, %c0_15] : memref<128x128xbf16, #tpu.memory_space<vmem>>, vector<128x128xbf16>
    %cst_16 = arith.constant dense<0.000000e+00> : vector<18x128xf32>
    %21 = tpu.matmul %19, %20, %cst_16 {dimension_numbers = #tpu.dot_dimension_numbers<[1], [0], [0], [1], [0, 0, 1, 1], [], []>} : vector<18x128xbf16>, vector<128x128xbf16>, vector<18x128xf32> -> vector<18x128xf32>
    %22 = arith.truncf %21 : vector<18x128xf32> to vector<18x128xbf16>
    %c0_17 = arith.constant 0 : index
    %c0_18 = arith.constant 0 : index
    %23 = vector.load %arg6[%c0_17, %c0_18] : memref<32x18xbf16, #tpu.memory_space<vmem>>, vector<32x18xbf16>
    %24 = vector.extract_strided_slice %22 {offsets = [0, 0], sizes = [18, 64], strides = [1, 1]} : vector<18x128xbf16> to vector<18x64xbf16>
    %cst_19 = arith.constant dense<0.000000e+00> : vector<32x64xf32>
    %25 = tpu.matmul %23, %24, %cst_19 {dimension_numbers = #tpu.dot_dimension_numbers<[1], [0], [0], [1], [0, 0, 1, 1], [], []>} : vector<32x18xbf16>, vector<18x64xbf16>, vector<32x64xf32> -> vector<32x64xf32>
    %c0_20 = arith.constant 0 : index
    %c0_21 = arith.constant 0 : index
    %26 = vector.load %arg7[%c0_20, %c0_21] : memref<32x18xbf16, #tpu.memory_space<vmem>>, vector<32x18xbf16>
    %27 = vector.extract_strided_slice %22 {offsets = [0, 64], sizes = [18, 64], strides = [1, 1]} : vector<18x128xbf16> to vector<18x64xbf16>
    %cst_22 = arith.constant dense<0.000000e+00> : vector<32x64xf32>
    %28 = tpu.matmul %26, %27, %cst_22 {dimension_numbers = #tpu.dot_dimension_numbers<[1], [0], [0], [1], [0, 0, 1, 1], [], []>} : vector<32x18xbf16>, vector<18x64xbf16>, vector<32x64xf32> -> vector<32x64xf32>
    %29 = arith.subf %25, %28 : vector<32x64xf32>
    %c0_23 = arith.constant 0 : index
    %c0_24 = arith.constant 0 : index
    %30 = vector.load %arg10[%c0_23, %c0_24] : memref<32x64xf32, #tpu.memory_space<vmem>>, vector<32x64xf32>
    tpu.vector_store %arg10[%c0_23, %c0_24], %29 {strides = array<i32>} : memref<32x64xf32, #tpu.memory_space<vmem>>, vector<32x64xf32>,
    return
  }
  func.func @transform_0(%arg0: i32) -> (i32, i32) {
    %c0_i32 = arith.constant 0 : i32
    %c0_i32_0 = arith.constant 0 : i32
    return %arg0, %c0_i32 : i32, i32
  }
  func.func @transform_1(%arg0: i32) -> (i32, i32) {
    %c0_i32 = arith.constant 0 : i32
    %c0_i32_0 = arith.constant 0 : i32
    %c0_i32_1 = arith.constant 0 : i32
    return %c0_i32, %c0_i32_0 : i32, i32
  }
  func.func @transform_2(%arg0: i32) -> (i32, i32) {
    %c0_i32 = arith.constant 0 : i32
    %c0_i32_0 = arith.constant 0 : i32
    %c0_i32_1 = arith.constant 0 : i32
    return %c0_i32, %c0_i32_0 : i32, i32
  }
  func.func @transform_3(%arg0: i32) -> (i32, i32) {
    %c0_i32 = arith.constant 0 : i32
    %c0_i32_0 = arith.constant 0 : i32
    %c0_i32_1 = arith.constant 0 : i32
    return %c0_i32, %c0_i32_0 : i32, i32
  }
  func.func @transform_4(%arg0: i32) -> (i32, i32) {
    %c0_i32 = arith.constant 0 : i32
    %c0_i32_0 = arith.constant 0 : i32
    %c0_i32_1 = arith.constant 0 : i32
    return %c0_i32, %c0_i32_0 : i32, i32
  }
  func.func @transform_5(%arg0: i32) -> (i32, i32) {
    %c0_i32 = arith.constant 0 : i32
    %c0_i32_0 = arith.constant 0 : i32
    %c0_i32_1 = arith.constant 0 : i32
    return %c0_i32, %c0_i32_0 : i32, i32
  }
  func.func @transform_6(%arg0: i32) -> (i32, i32) {
    %c0_i32 = arith.constant 0 : i32
    %c0_i32_0 = arith.constant 0 : i32
    %c0_i32_1 = arith.constant 0 : i32
    return %c0_i32, %c0_i32_0 : i32, i32
  }
  func.func @transform_7(%arg0: i32) -> (i32, i32) {
    %c0_i32 = arith.constant 0 : i32
    %c0_i32_0 = arith.constant 0 : i32
    %c0_i32_1 = arith.constant 0 : i32
    return %c0_i32, %c0_i32_0 : i32, i32
  }
  func.func @transform_8(%arg0: i32) -> (i32, i32) {
    %c0_i32 = arith.constant 0 : i32
    %c0_i32_0 = arith.constant 0 : i32
    %c0_i32_1 = arith.constant 0 : i32
    return %c0_i32, %c0_i32_0 : i32, i32
  }
  func.func @transform_9(%arg0: i32) -> (i32, i32) {
    %c0_i32 = arith.constant 0 : i32
    %c0_i32_0 = arith.constant 0 : i32
    return %arg0, %c0_i32 : i32, i32
  }
}

</mosaic_0001>

<llo_original>
// kernel: fourier_unit_apply.1
$region0: #{fourier_unit_apply.1}
  #allocation0 [shape = 'u32[]', space=smem, size = 0x4, offset = 0x4, fixed_abs, tag = 'smem constant byte address 0x4 - core index']
  #allocation1 [shape = 'u32[144,128]{1,0:T(1,128)}', space=vmem, size = 0x12000, scoped, tag = 'internal scratch']
  %s0 = inlined_call_operand.vmem [shape: bf16[32,64], index: 0, kind: input, shape index: {}]
  %s1 = inlined_call_operand.vmem [shape: bf16[64,256], index: 1, kind: input, shape index: {}]
  %s2 = inlined_call_operand.vmem [shape: bf16[18,32], index: 2, kind: input, shape index: {}]
  %s3 = inlined_call_operand.vmem [shape: bf16[18,32], index: 3, kind: input, shape index: {}]
  %s4 = inlined_call_operand.vmem [shape: bf16[128,128], index: 4, kind: input, shape index: {}]
  %s5 = inlined_call_operand.vmem [shape: bf16[32,18], index: 5, kind: input, shape index: {}]
  %s6 = inlined_call_operand.vmem [shape: bf16[32,18], index: 6, kind: input, shape index: {}]
  %s7 = inlined_call_operand.vmem [shape: f32[1,128], index: 7, kind: input, shape index: {}]
  %s8 = inlined_call_operand.vmem [shape: f32[1,128], index: 8, kind: input, shape index: {}]
  %s9 = inlined_call_operand.vmem [shape: f32[32,64], index: 9, kind: output, shape index: {}]
  %s10 = sld [smem:[#allocation0]]
  $region46: #{fourier_unit_apply.1} parent=0
    _
  %s12 = ssub.s32 1, %s10
  %s13 = scalar_select 0, %s12, %s10
  // Predicated region
  $region2: #{fourier_unit_apply.1} parent=0 // pred_check
    _
  $region3: #{fourier_unit_apply.1} parent=0 // pred_check_branch
    %15 = sbr.rel (0) target = $region5
  $region4: #{fourier_unit_apply.1} parent=0 // pred_region
    _
  $region5: #{fourier_unit_apply.1} parent=0 // pred_fallthru
    _
  // Predicated region
  $region6: #{fourier_unit_apply.1} parent=0 // pred_check
    _
  $region7: #{fourier_unit_apply.1} parent=0 // pred_check_branch
    %17 = sbr.rel (0) target = $region9
  $region8: #{fourier_unit_apply.1} parent=0 // pred_region
    _
  $region9: #{fourier_unit_apply.1} parent=0 // pred_fallthru
    _
  // Predicated region
  $region10: #{fourier_unit_apply.1} parent=0 // pred_check
    _
  $region11: #{fourier_unit_apply.1} parent=0 // pred_check_branch
    %19 = sbr.rel (0) target = $region13
  $region12: #{fourier_unit_apply.1} parent=0 // pred_region
    _
  $region13: #{fourier_unit_apply.1} parent=0 // pred_fallthru
    _
  // Predicated region
  $region14: #{fourier_unit_apply.1} parent=0 // pred_check
    _
  $region15: #{fourier_unit_apply.1} parent=0 // pred_check_branch
    %21 = sbr.rel (0) target = $region17
  $region16: #{fourier_unit_apply.1} parent=0 // pred_region
    _
  $region17: #{fourier_unit_apply.1} parent=0 // pred_fallthru
    _
  // Predicated region
  $region18: #{fourier_unit_apply.1} parent=0 // pred_check
    _
  $region19: #{fourier_unit_apply.1} parent=0 // pred_check_branch
    %23 = sbr.rel (0) target = $region21
  $region20: #{fourier_unit_apply.1} parent=0 // pred_region
    _
  $region21: #{fourier_unit_apply.1} parent=0 // pred_fallthru
    _
  // Predicated region
  $region22: #{fourier_unit_apply.1} parent=0 // pred_check
    _
  $region23: #{fourier_unit_apply.1} parent=0 // pred_check_branch
    %25 = sbr.rel (0) target = $region25
  $region24: #{fourier_unit_apply.1} parent=0 // pred_region
    _
  $region25: #{fourier_unit_apply.1} parent=0 // pred_fallthru
    _
  // Predicated region
  $region26: #{fourier_unit_apply.1} parent=0 // pred_check
    _
  $region27: #{fourier_unit_apply.1} parent=0 // pred_check_branch
    %27 = sbr.rel (0) target = $region29
  $region28: #{fourier_unit_apply.1} parent=0 // pred_region
    _
  $region29: #{fourier_unit_apply.1} parent=0 // pred_fallthru
    _
  // Predicated region
  $region30: #{fourier_unit_apply.1} parent=0 // pred_check
    _
  $region31: #{fourier_unit_apply.1} parent=0 // pred_check_branch
    %29 = sbr.rel (0) target = $region33
  $region32: #{fourier_unit_apply.1} parent=0 // pred_region
    _
  $region33: #{fourier_unit_apply.1} parent=0 // pred_fallthru
    _
  // Predicated region
  $region34: #{fourier_unit_apply.1} parent=0 // pred_check
    _
  $region35: #{fourier_unit_apply.1} parent=0 // pred_check_branch
    %31 = sbr.rel (0) target = $region37
  $region36: #{fourier_unit_apply.1} parent=0 // pred_region
    _
  $region37: #{fourier_unit_apply.1} parent=0 // pred_fallthru
    _
  %v33 = vld [vmem:[%s0] sm:$0xf]
  %v34 = vld [vmem:[%s0 + $0x4] sm:$0xf]
  %v35 = vld [vmem:[%s0 + $0x8] sm:$0xf]
  %v36 = vld [vmem:[%s0 + $0xc] sm:$0xf]
  %v37 = vld [vmem:[%s1] sm:$0xff]
  %v38 = vld [vmem:[%s1 + $0x8] sm:$0xff]
  %v39 = vld [vmem:[%s1 + $0x10] sm:$0xff]
  %v40 = vld [vmem:[%s1 + $0x18] sm:$0xff]
  %v41 = vld [vmem:[%s1 + $0x20] sm:$0xff]
  %v42 = vld [vmem:[%s1 + $0x28] sm:$0xff]
  %v43 = vld [vmem:[%s1 + $0x30] sm:$0xff]
  %v44 = vld [vmem:[%s1 + $0x38] sm:$0xff]
  %v49 = vunpack.c.l.b16 %v33
  %v50 = vunpack.c.l.b16 %v34
  %v51 = vunpack.c.l.b16 %v35
  %v52 = vunpack.c.l.b16 %v36
  %v53 = vpack.c.b16 %v50, %v49
  %v54 = vpack.c.b16 %v52, %v51
  %v63 = vunpack.c.l.b16 %v37
  %v64 = vunpack.c.h.b16 %v37
  %v65 = vunpack.c.l.b16 %v38
  %v66 = vunpack.c.h.b16 %v38
  %v67 = vunpack.c.l.b16 %v39
  %v68 = vunpack.c.h.b16 %v39
  %v69 = vunpack.c.l.b16 %v40
  %v70 = vunpack.c.h.b16 %v40
  %v71 = vunpack.c.l.b16 %v41
  %v72 = vunpack.c.h.b16 %v41
  %v73 = vunpack.c.l.b16 %v42
  %v74 = vunpack.c.h.b16 %v42
  %v75 = vunpack.c.l.b16 %v43
  %v76 = vunpack.c.h.b16 %v43
  %v77 = vunpack.c.l.b16 %v44
  %v78 = vunpack.c.h.b16 %v44
  %v79 = vpack.c.b16 %v65, %v63
  %v80 = vpack.c.b16 %v66, %v64
  %v81 = vpack.c.b16 %v69, %v67
  %v82 = vpack.c.b16 %v70, %v68
  %v83 = vpack.c.b16 %v73, %v71
  %v84 = vpack.c.b16 %v74, %v72
  %v85 = vpack.c.b16 %v77, %v75
  %v86 = vpack.c.b16 %v78, %v76
  %vm95 = vcmask 523264
  %v97 = vsel %vm95, %v53, 0
  %v100 = vsel %vm95, %v54, 0
  %102 = vmatprep.subr.bf16.mxu0 %v80
  %103 = vmatpush1.bf16.msra.mxu0 %v79
  %104 = vmatprep.subr.bf16.mxu0 %v82
  %105 = vmatpush1.bf16.msra.mxu0 %v81
  %106 = vmatprep.subr.bf16.mxu0 %v84
  %107 = vmatpush1.bf16.msra.mxu0 %v83
  %108 = vmatprep.subr.bf16.mxu0 %v86
  %109 = vmatpush1.bf16.msra.mxu0 %v85
  %110 = vmatprep.subr.bf16.mxu0 0
  %111 = vmatpush1.bf16.msra.mxu0 0
  %112 = vmatprep.subr.bf16.mxu0 0
  %113 = vmatpush1.bf16.msra.mxu0 0
  %114 = vmatprep.subr.bf16.mxu0 0
  %115 = vmatpush1.bf16.msra.mxu0 0
  %116 = vmatprep.subr.bf16.mxu0 0
  %117 = vmatpush1.bf16.msra.mxu0 0
  %118 = vmatprep.subr.bf16.mxu0 0
  %119 = vmatpush1.bf16.msra.mxu0 0
  %120 = vmatprep.subr.bf16.mxu0 0
  %121 = vmatpush1.bf16.msra.mxu0 0
  %122 = vmatprep.subr.bf16.mxu0 0
  %123 = vmatpush1.bf16.msra.mxu0 0
  %124 = vmatprep.subr.bf16.mxu0 0
  %125 = vmatpush1.bf16.msra.mxu0 0
  %126 = vmatprep.subr.bf16.mxu0 0
  %127 = vmatpush1.bf16.msra.mxu0 0
  %128 = vmatprep.subr.bf16.mxu0 0
  %129 = vmatpush1.bf16.msra.mxu0 0
  %130 = vmatprep.subr.bf16.mxu0 0
  %131 = vmatpush1.bf16.msra.mxu0 0
  %132 = vmatprep.subr.bf16.mxu0 0
  %133 = vmatpush1.bf16.msra.mxu0 0
  %134 = vmatprep.mubr.bf16.mxu0 0
  %135 = vmatmul.mubr.bf16.gmra.mrb[0].mxu0 %v97
  %v136 = vpop.f32.mrb[0].mxu0
  %v137 = vadd.f32 0.0, %v136
  %v138 = vpop.f32.mrb[0].mxu0
  %v139 = vadd.f32 0.0, %v138
  %v140 = vpop.f32.mrb[0].mxu0
  %v141 = vadd.f32 0.0, %v140
  %v142 = vpop.f32.mrb[0].mxu0
  %v143 = vadd.f32 0.0, %v142
  %144 = vmatprep.mubr.bf16.mxu0 0
  %145 = vmatmul.mubr.bf16.gmra.mrb[0].mxu0 %v100
  %v146 = vpop.f32.mrb[0].mxu0
  %v147 = vadd.f32 0.0, %v146
  %v148 = vpop.f32.mrb[0].mxu0
  %v149 = vadd.f32 0.0, %v148
  %v150 = vpop.f32.mrb[0].mxu0
  %v151 = vadd.f32 0.0, %v150
  %v152 = vpop.f32.mrb[0].mxu0
  %v153 = vadd.f32 0.0, %v152
  %154 = vdwg.mxu0
  %v155 = vpack.c.bf16 %v141, %v137
  %v156 = vpack.c.bf16 %v143, %v139
  %v157 = vpack.c.bf16 %v151, %v147
  %v158 = vpack.c.bf16 %v153, %v149
  %v159 = vld [vmem:[%s2] sm:$0xf]
  %v160 = vld [vmem:[%s2 + $0x4] sm:$0xf]
  %v161 = vld [vmem:[%s2 + $0x8] sm:$0x1]
  %v165 = vunpack.c.l.b16 %v159
  %v166 = vunpack.c.l.b16 %v160
  %v167 = vunpack.c.l.b16 %v161
  %v168 = vpack.c.b16 %v166, %v165
  %v169 = vpack.c.b16 %v167, %v167
  %vm170 = vcmask 261120
  %v172 = vsel %vm170, %v168, 0
  %v175 = vsel %vm170, %v169, 0
  %177 = vmatprep.subr.bf16.mxu0 0
  %178 = vmatpush1.bf16.msra.mxu0 %v155
  %179 = vmatprep.subr.bf16.mxu0 0
  %180 = vmatpush1.bf16.msra.mxu0 %v157
  %181 = vmatprep.subr.bf16.mxu0 0
  %182 = vmatpush1.bf16.msra.mxu0 0
  %183 = vmatprep.subr.bf16.mxu0 0
  %184 = vmatpush1.bf16.msra.mxu0 0
  %185 = vmatprep.subr.bf16.mxu0 0
  %186 = vmatpush1.bf16.msra.mxu0 0
  %187 = vmatprep.subr.bf16.mxu0 0
  %188 = vmatpush1.bf16.msra.mxu0 0
  %189 = vmatprep.subr.bf16.mxu0 0
  %190 = vmatpush1.bf16.msra.mxu0 0
  %191 = vmatprep.subr.bf16.mxu0 0
  %192 = vmatpush1.bf16.msra.mxu0 0
  %193 = vmatprep.subr.bf16.mxu0 0
  %194 = vmatpush1.bf16.msra.mxu0 0
  %195 = vmatprep.subr.bf16.mxu0 0
  %196 = vmatpush1.bf16.msra.mxu0 0
  %197 = vmatprep.subr.bf16.mxu0 0
  %198 = vmatpush1.bf16.msra.mxu0 0
  %199 = vmatprep.subr.bf16.mxu0 0
  %200 = vmatpush1.bf16.msra.mxu0 0
  %201 = vmatprep.subr.bf16.mxu0 0
  %202 = vmatpush1.bf16.msra.mxu0 0
  %203 = vmatprep.subr.bf16.mxu0 0
  %204 = vmatpush1.bf16.msra.mxu0 0
  %205 = vmatprep.subr.bf16.mxu0 0
  %206 = vmatpush1.bf16.msra.mxu0 0
  %207 = vmatprep.subr.bf16.mxu0 0
  %208 = vmatpush1.bf16.msra.mxu0 0
  %209 = vmatprep.mubr.bf16.mxu0 0
  %210 = vmatmul.mubr.bf16.gmra.mrb[0].mxu0 %v172
  %v211 = vpop.f32.mrb[0].mxu0
  %v212 = vadd.f32 0.0, %v211
  %v213 = vpop.f32.mrb[0].mxu0
  %v214 = vpop.f32.mrb[0].mxu0
  %v215 = vadd.f32 0.0, %v214
  %v216 = vpop.f32.mrb[0].mxu0
  %217 = vmatprep.mubr.bf16.mxu0 0
  %218 = vmatmul.mubr.bf16.gmra.mrb[0].mxu0 %v175
  %v219 = vpop.f32.mrb[0].mxu0
  %v220 = vadd.f32 0.0, %v219
  %v221 = vpop.f32.mrb[0].mxu0
  %v222 = vpop.f32.mrb[0].mxu0
  %v223 = vpop.f32.mrb[0].mxu0
  %224 = vdwg.mxu0
  %v225 = vld [vmem:[%s3] sm:$0xf]
  %v226 = vld [vmem:[%s3 + $0x4] sm:$0xf]
  %v227 = vld [vmem:[%s3 + $0x8] sm:$0x1]
  %v231 = vunpack.c.l.b16 %v225
  %v232 = vunpack.c.l.b16 %v226
  %v233 = vunpack.c.l.b16 %v227
  %v234 = vpack.c.b16 %v232, %v231
  %v235 = vpack.c.b16 %v233, %v233
  %v237 = vsel %vm170, %v234, 0
  %v240 = vsel %vm170, %v235, 0
  %242 = vmatprep.subr.bf16.mxu0 0
  %243 = vmatpush1.bf16.msra.mxu0 %v156
  %244 = vmatprep.subr.bf16.mxu0 0
  %245 = vmatpush1.bf16.msra.mxu0 %v158
  %246 = vmatprep.subr.bf16.mxu0 0
  %247 = vmatpush1.bf16.msra.mxu0 0
  %248 = vmatprep.subr.bf16.mxu0 0
  %249 = vmatpush1.bf16.msra.mxu0 0
  %250 = vmatprep.subr.bf16.mxu0 0
  %251 = vmatpush1.bf16.msra.mxu0 0
  %252 = vmatprep.subr.bf16.mxu0 0
  %253 = vmatpush1.bf16.msra.mxu0 0
  %254 = vmatprep.subr.bf16.mxu0 0
  %255 = vmatpush1.bf16.msra.mxu0 0
  %256 = vmatprep.subr.bf16.mxu0 0
  %257 = vmatpush1.bf16.msra.mxu0 0
  %258 = vmatprep.subr.bf16.mxu0 0
  %259 = vmatpush1.bf16.msra.mxu0 0
  %260 = vmatprep.subr.bf16.mxu0 0
  %261 = vmatpush1.bf16.msra.mxu0 0
  %262 = vmatprep.subr.bf16.mxu0 0
  %263 = vmatpush1.bf16.msra.mxu0 0
  %264 = vmatprep.subr.bf16.mxu0 0
  %265 = vmatpush1.bf16.msra.mxu0 0
  %266 = vmatprep.subr.bf16.mxu0 0
  %267 = vmatpush1.bf16.msra.mxu0 0
  %268 = vmatprep.subr.bf16.mxu0 0
  %269 = vmatpush1.bf16.msra.mxu0 0
  %270 = vmatprep.subr.bf16.mxu0 0
  %271 = vmatpush1.bf16.msra.mxu0 0
  %272 = vmatprep.subr.bf16.mxu0 0
  %273 = vmatpush1.bf16.msra.mxu0 0
  %274 = vmatprep.mubr.bf16.mxu0 0
  %275 = vmatmul.mubr.bf16.gmra.mrb[0].mxu0 %v237
  %v276 = vpop.f32.mrb[0].mxu0
  %v277 = vadd.f32 0.0, %v276
  %v278 = vpop.f32.mrb[0].mxu0
  %v279 = vpop.f32.mrb[0].mxu0
  %v280 = vadd.f32 0.0, %v279
  %v281 = vpop.f32.mrb[0].mxu0
  %282 = vmatprep.mubr.bf16.mxu0 0
  %283 = vmatmul.mubr.bf16.gmra.mrb[0].mxu0 %v240
  %v284 = vpop.f32.mrb[0].mxu0
  %v285 = vadd.f32 0.0, %v284
  %v286 = vpop.f32.mrb[0].mxu0
  %v287 = vpop.f32.mrb[0].mxu0
  %v288 = vpop.f32.mrb[0].mxu0
  %289 = vdwg.mxu0
  %v290 = vsub.f32 %v212, %v277
  %v291 = vsub.f32 %v215, %v280
  %v292 = vsub.f32 %v220, %v285
  %v293 = vld [vmem:[%s7] sm:$0x1]
  %v295 = vlaneseq
  %v296 = vshrl.u32 %v295, 7
  %v297 = vsub.s32 0, %v296
  %v298 = vrot.slane %v293, %v297
  %v300 = vmul.f32 %v290, %v298
  %v301 = vmul.f32 %v291, %v298
  %v302 = vmul.f32 %v292, %v298
  %v303 = vld [vmem:[%s8] sm:$0x1]
  %v305 = vlaneseq
  %v306 = vshrl.u32 %v305, 7
  %v307 = vsub.s32 0, %v306
  %v308 = vrot.slane %v303, %v307
  %v310 = vadd.f32 %v300, %v308
  %v311 = vadd.f32 %v301, %v308
  %v312 = vadd.f32 %v302, %v308
  %v313 = vmax.f32 %v310, 0.0
  %v314 = vmax.f32 %v311, 0.0
  %v315 = vmax.f32 %v312, 0.0
  %v316 = vpack.c.bf16 %v314, %v313
  %v317 = vpack.c.bf16 %v315, %v315
  %v318 = vld [vmem:[%s4] sm:$0xf]
  %v319 = vld [vmem:[%s4 + $0x4] sm:$0xf]
  %v320 = vld [vmem:[%s4 + $0x8] sm:$0xf]
  %v321 = vld [vmem:[%s4 + $0xc] sm:$0xf]
  %v322 = vld [vmem:[%s4 + $0x10] sm:$0xf]
  %v323 = vld [vmem:[%s4 + $0x14] sm:$0xf]
  %v324 = vld [vmem:[%s4 + $0x18] sm:$0xf]
  %v325 = vld [vmem:[%s4 + $0x1c] sm:$0xf]
  %v326 = vld [vmem:[%s4 + $0x20] sm:$0xf]
  %v327 = vld [vmem:[%s4 + $0x24] sm:$0xf]
  %v328 = vld [vmem:[%s4 + $0x28] sm:$0xf]
  %v329 = vld [vmem:[%s4 + $0x2c] sm:$0xf]
  %v330 = vld [vmem:[%s4 + $0x30] sm:$0xf]
  %v331 = vld [vmem:[%s4 + $0x34] sm:$0xf]
  %v332 = vld [vmem:[%s4 + $0x38] sm:$0xf]
  %v333 = vld [vmem:[%s4 + $0x3c] sm:$0xf]
  %v350 = vunpack.c.l.b16 %v318
  %v351 = vunpack.c.l.b16 %v319
  %v352 = vunpack.c.l.b16 %v320
  %v353 = vunpack.c.l.b16 %v321
  %v354 = vunpack.c.l.b16 %v322
  %v355 = vunpack.c.l.b16 %v323
  %v356 = vunpack.c.l.b16 %v324
  %v357 = vunpack.c.l.b16 %v325
  %v358 = vunpack.c.l.b16 %v326
  %v359 = vunpack.c.l.b16 %v327
  %v360 = vunpack.c.l.b16 %v328
  %v361 = vunpack.c.l.b16 %v329
  %v362 = vunpack.c.l.b16 %v330
  %v363 = vunpack.c.l.b16 %v331
  %v364 = vunpack.c.l.b16 %v332
  %v365 = vunpack.c.l.b16 %v333
  %v366 = vpack.c.b16 %v351, %v350
  %v367 = vpack.c.b16 %v353, %v352
  %v368 = vpack.c.b16 %v355, %v354
  %v369 = vpack.c.b16 %v357, %v356
  %v370 = vpack.c.b16 %v359, %v358
  %v371 = vpack.c.b16 %v361, %v360
  %v372 = vpack.c.b16 %v363, %v362
  %v373 = vpack.c.b16 %v365, %v364
  %382 = vmatprep.subr.bf16.mxu0 0
  %383 = vmatpush1.bf16.msra.mxu0 %v366
  %384 = vmatprep.subr.bf16.mxu0 0
  %385 = vmatpush1.bf16.msra.mxu0 %v367
  %386 = vmatprep.subr.bf16.mxu0 0
  %387 = vmatpush1.bf16.msra.mxu0 %v368
  %388 = vmatprep.subr.bf16.mxu0 0
  %389 = vmatpush1.bf16.msra.mxu0 %v369
  %390 = vmatprep.subr.bf16.mxu0 0
  %391 = vmatpush1.bf16.msra.mxu0 %v370
  %392 = vmatprep.subr.bf16.mxu0 0
  %393 = vmatpush1.bf16.msra.mxu0 %v371
  %394 = vmatprep.subr.bf16.mxu0 0
  %395 = vmatpush1.bf16.msra.mxu0 %v372
  %396 = vmatprep.subr.bf16.mxu0 0
  %397 = vmatpush1.bf16.msra.mxu0 %v373
  %398 = vmatprep.subr.bf16.mxu0 0
  %399 = vmatpush1.bf16.msra.mxu0 0
  %400 = vmatprep.subr.bf16.mxu0 0
  %401 = vmatpush1.bf16.msra.mxu0 0
  %402 = vmatprep.subr.bf16.mxu0 0
  %403 = vmatpush1.bf16.msra.mxu0 0
  %404 = vmatprep.subr.bf16.mxu0 0
  %405 = vmatpush1.bf16.msra.mxu0 0
  %406 = vmatprep.subr.bf16.mxu0 0
  %407 = vmatpush1.bf16.msra.mxu0 0
  %408 = vmatprep.subr.bf16.mxu0 0
  %409 = vmatpush1.bf16.msra.mxu0 0
  %410 = vmatprep.subr.bf16.mxu0 0
  %411 = vmatpush1.bf16.msra.mxu0 0
  %412 = vmatprep.subr.bf16.mxu0 0
  %413 = vmatpush1.bf16.msra.mxu0 0
  %414 = vmatprep.mubr.bf16.mxu0 0
  %415 = vmatmul.mubr.bf16.gmra.mrb[0].mxu0 %v316
  %v416 = vpop.f32.mrb[0].mxu0
  %v417 = vadd.f32 0.0, %v416
  %v418 = vpop.f32.mrb[0].mxu0
  %v419 = vpop.f32.mrb[0].mxu0
  %v420 = vadd.f32 0.0, %v419
  %v421 = vpop.f32.mrb[0].mxu0
  %422 = vmatprep.mubr.bf16.mxu0 0
  %423 = vmatmul.mubr.bf16.gmra.mrb[0].mxu0 %v317
  %v424 = vpop.f32.mrb[0].mxu0
  %v425 = vadd.f32 0.0, %v424
  %v426 = vpop.f32.mrb[0].mxu0
  %v427 = vpop.f32.mrb[0].mxu0
  %v428 = vpop.f32.mrb[0].mxu0
  %429 = vdwg.mxu0
  %v430 = vpack.c.bf16 %v420, %v417
  %v431 = vpack.c.bf16 %v425, %v425
  %v432 = vld [vmem:[%s5] sm:$0xf]
  %v433 = vld [vmem:[%s5 + $0x4] sm:$0xf]
  %v434 = vld [vmem:[%s5 + $0x8] sm:$0xf]
  %v435 = vld [vmem:[%s5 + $0xc] sm:$0xf]
  %v440 = vunpack.c.l.b16 %v432
  %v441 = vunpack.c.l.b16 %v433
  %v442 = vunpack.c.l.b16 %v434
  %v443 = vunpack.c.l.b16 %v435
  %v444 = vpack.c.b16 %v441, %v440
  %v445 = vpack.c.b16 %v443, %v442
  %vm446 = vcmask 146432
  %v448 = vsel %vm446, %v444, 0
  %v451 = vsel %vm446, %v445, 0
  %vm453 = vcmask 1040384
  %v455 = vsel %vm453, %v431, 0
  %457 = vmatprep.subr.bf16.mxu0 0
  %458 = vmatpush1.bf16.msra.mxu0 %v430
  %459 = vmatprep.subr.bf16.mxu0 0
  %460 = vmatpush1.bf16.msra.mxu0 %v455
  %461 = vmatprep.subr.bf16.mxu0 0
  %462 = vmatpush1.bf16.msra.mxu0 0
  %463 = vmatprep.subr.bf16.mxu0 0
  %464 = vmatpush1.bf16.msra.mxu0 0
  %465 = vmatprep.subr.bf16.mxu0 0
  %466 = vmatpush1.bf16.msra.mxu0 0
  %467 = vmatprep.subr.bf16.mxu0 0
  %468 = vmatpush1.bf16.msra.mxu0 0
  %469 = vmatprep.subr.bf16.mxu0 0
  %470 = vmatpush1.bf16.msra.mxu0 0
  %471 = vmatprep.subr.bf16.mxu0 0
  %472 = vmatpush1.bf16.msra.mxu0 0
  %473 = vmatprep.subr.bf16.mxu0 0
  %474 = vmatpush1.bf16.msra.mxu0 0
  %475 = vmatprep.subr.bf16.mxu0 0
  %476 = vmatpush1.bf16.msra.mxu0 0
  %477 = vmatprep.subr.bf16.mxu0 0
  %478 = vmatpush1.bf16.msra.mxu0 0
  %479 = vmatprep.subr.bf16.mxu0 0
  %480 = vmatpush1.bf16.msra.mxu0 0
  %481 = vmatprep.subr.bf16.mxu0 0
  %482 = vmatpush1.bf16.msra.mxu0 0
  %483 = vmatprep.subr.bf16.mxu0 0
  %484 = vmatpush1.bf16.msra.mxu0 0
  %485 = vmatprep.subr.bf16.mxu0 0
  %486 = vmatpush1.bf16.msra.mxu0 0
  %487 = vmatprep.subr.bf16.mxu0 0
  %488 = vmatpush1.bf16.msra.mxu0 0
  %489 = vmatprep.mubr.bf16.mxu0 0
  %490 = vmatmul.mubr.bf16.gmra.mrb[0].mxu0 %v448
  %v491 = vpop.f32.mrb[0].mxu0
  %v492 = vadd.f32 0.0, %v491
  %v493 = vpop.f32.mrb[0].mxu0
  %v494 = vpop.f32.mrb[0].mxu0
  %v495 = vadd.f32 0.0, %v494
  %v496 = vpop.f32.mrb[0].mxu0
  %497 = vmatprep.mubr.bf16.mxu0 0
  %498 = vmatmul.mubr.bf16.gmra.mrb[0].mxu0 %v451
  %v499 = vpop.f32.mrb[0].mxu0
  %v500 = vadd.f32 0.0, %v499
  %v501 = vpop.f32.mrb[0].mxu0
  %v502 = vpop.f32.mrb[0].mxu0
  %v503 = vadd.f32 0.0, %v502
  %v504 = vpop.f32.mrb[0].mxu0
  %505 = vdwg.mxu0
  %v506 = vld [vmem:[%s6] sm:$0xf]
  %v507 = vld [vmem:[%s6 + $0x4] sm:$0xf]
  %v508 = vld [vmem:[%s6 + $0x8] sm:$0xf]
  %v509 = vld [vmem:[%s6 + $0xc] sm:$0xf]
  %v514 = vunpack.c.l.b16 %v506
  %v515 = vunpack.c.l.b16 %v507
  %v516 = vunpack.c.l.b16 %v508
  %v517 = vunpack.c.l.b16 %v509
  %v518 = vpack.c.b16 %v515, %v514
  %v519 = vpack.c.b16 %v517, %v516
  %522 = vrot.lane.b32.xlu0 %v430, 64
  %v523 = vpop.permute.xlu0 %522
  %524 = vrot.lane.b32.xlu0 %v431, 64
  %v525 = vpop.permute.xlu0 %524
  %v528 = vsel %vm446, %v518, 0
  %v531 = vsel %vm446, %v519, 0
  %v534 = vsel %vm453, %v525, 0
  %536 = vmatprep.subr.bf16.mxu0 0
  %537 = vmatpush1.bf16.msra.mxu0 %v523
  %538 = vmatprep.subr.bf16.mxu0 0
  %539 = vmatpush1.bf16.msra.mxu0 %v534
  %540 = vmatprep.subr.bf16.mxu0 0
  %541 = vmatpush1.bf16.msra.mxu0 0
  %542 = vmatprep.subr.bf16.mxu0 0
  %543 = vmatpush1.bf16.msra.mxu0 0
  %544 = vmatprep.subr.bf16.mxu0 0
  %545 = vmatpush1.bf16.msra.mxu0 0
  %546 = vmatprep.subr.bf16.mxu0 0
  %547 = vmatpush1.bf16.msra.mxu0 0
  %548 = vmatprep.subr.bf16.mxu0 0
  %549 = vmatpush1.bf16.msra.mxu0 0
  %550 = vmatprep.subr.bf16.mxu0 0
  %551 = vmatpush1.bf16.msra.mxu0 0
  %552 = vmatprep.subr.bf16.mxu0 0
  %553 = vmatpush1.bf16.msra.mxu0 0
  %554 = vmatprep.subr.bf16.mxu0 0
  %555 = vmatpush1.bf16.msra.mxu0 0
  %556 = vmatprep.subr.bf16.mxu0 0
  %557 = vmatpush1.bf16.msra.mxu0 0
  %558 = vmatprep.subr.bf16.mxu0 0
  %559 = vmatpush1.bf16.msra.mxu0 0
  %560 = vmatprep.subr.bf16.mxu0 0
  %561 = vmatpush1.bf16.msra.mxu0 0
  %562 = vmatprep.subr.bf16.mxu0 0
  %563 = vmatpush1.bf16.msra.mxu0 0
  %564 = vmatprep.subr.bf16.mxu0 0
  %565 = vmatpush1.bf16.msra.mxu0 0
  %566 = vmatprep.subr.bf16.mxu0 0
  %567 = vmatpush1.bf16.msra.mxu0 0
  %568 = vmatprep.mubr.bf16.mxu0 0
  %569 = vmatmul.mubr.bf16.gmra.mrb[0].mxu0 %v528
  %v570 = vpop.f32.mrb[0].mxu0
  %v571 = vadd.f32 0.0, %v570
  %v572 = vpop.f32.mrb[0].mxu0
  %v573 = vpop.f32.mrb[0].mxu0
  %v574 = vadd.f32 0.0, %v573
  %v575 = vpop.f32.mrb[0].mxu0
  %576 = vmatprep.mubr.bf16.mxu0 0
  %577 = vmatmul.mubr.bf16.gmra.mrb[0].mxu0 %v531
  %v578 = vpop.f32.mrb[0].mxu0
  %v579 = vadd.f32 0.0, %v578
  %v580 = vpop.f32.mrb[0].mxu0
  %v581 = vpop.f32.mrb[0].mxu0
  %v582 = vadd.f32 0.0, %v581
  %v583 = vpop.f32.mrb[0].mxu0
  %584 = vdwg.mxu0
  %v585 = vsub.f32 %v492, %v571
  %v586 = vsub.f32 %v495, %v574
  %v587 = vsub.f32 %v500, %v579
  %v588 = vsub.f32 %v503, %v582
  %589 = vst.msk [vmem:[%s9] sm:$0xff] %vm95, %v585
  %590 = vst.msk [vmem:[%s9 + $0x8] sm:$0xff] %vm95, %v586
  %591 = vst.msk [vmem:[%s9 + $0x10] sm:$0xff] %vm95, %v587
  %592 = vst.msk [vmem:[%s9 + $0x18] sm:$0xff] %vm95, %v588
  // Predicated region
  $region38: #{fourier_unit_apply.1} parent=0 // pred_check
    _
  $region39: #{fourier_unit_apply.1} parent=0 // pred_check_branch
    %594 = sbr.rel (0) target = $region41
  $region40: #{fourier_unit_apply.1} parent=0 // pred_region
    _
  $region41: #{fourier_unit_apply.1} parent=0 // pred_fallthru
    _
  // Predicated region
  $region42: #{fourier_unit_apply.1} parent=0 // pred_check
    _
  $region43: #{fourier_unit_apply.1} parent=0 // pred_check_branch
    %596 = sbr.rel (0) target = $region45
  $region44: #{fourier_unit_apply.1} parent=0 // pred_region
    _
  $region45: #{fourier_unit_apply.1} parent=0 // pred_fallthru
    _

</llo_original>
